<compile_context>
chip_gen: v7x
topology: tpu7x:2x2x1
jax: 0.10.0
libtpu: 0.0.40
codegen_flags: <defaults>
</compile_context>

<pallas_src>
import math
import functools

import jax
import jax.numpy as jnp
from jax.experimental import pallas as pl
from jax.experimental.pallas import tpu as pltpu


# ---------------------------------------------------------------------------
# VMEM budgeting helpers (per-generation instead of hard-coded constants).
# ---------------------------------------------------------------------------
def _vmem_caps():
    cap = 64 << 20  # conservative default (v7x per-TensorCore physical VMEM)
    try:
        info = pltpu.get_tpu_info()
        c = getattr(info, "vmem_capacity_bytes", None)
        if c:
            cap = int(c)
    except Exception:
        pass
    # Total resident working set (double-buffered ins + outs + scratch) budget.
    budget = int(min(cap // 3, 24 << 20))   # ~21 MiB on v7x, 24 MiB on v5e/v6e
    return cap, budget


def _vmem_limit(need_bytes, cap_bytes):
    # Explicit scoped-VMEM limit: at least the (raised) 32 MiB default, plus
    # headroom over the actual working set, never above physical VMEM.
    return int(min(cap_bytes, max(need_bytes + (4 << 20), 32 << 20)))


# ---------------------------------------------------------------------------
# Pool kernel: block is (1, TR, s, Wo, s*F); reduce the s*s window with
# lane-dense element-wise combines (no cross-sublane reduction).
# ---------------------------------------------------------------------------
def _pool_kernel(x_ref, o_ref, *, s, feat, mode):
    x = x_ref[0]  # (TR, s, Wo, s*feat), native dtype

    if mode == "average":
        # Cast per window-row slice (not the whole block) -> peak live data
        # stays ~1.5x the block instead of 2x+ for bf16 inputs.
        red = x[:, 0].astype(jnp.float32)
        for ki in range(1, s):
            red = red + x[:, ki].astype(jnp.float32)      # (TR, Wo, s*feat) f32
        out = red[:, :, 0:feat]
        for kj in range(1, s):
            out = out + red[:, :, kj * feat:(kj + 1) * feat]
        out = out * (1.0 / (s * s))
    else:  # "max"
        red = x[:, 0]
        for ki in range(1, s):
            red = jnp.maximum(red, x[:, ki])              # (TR, Wo, s*feat)
        out = red[:, :, 0:feat]
        for kj in range(1, s):
            out = jnp.maximum(out, red[:, :, kj * feat:(kj + 1) * feat])

    o_ref[0] = out.astype(o_ref.dtype)


# ---------------------------------------------------------------------------
# Conv kernels.
# ---------------------------------------------------------------------------
def _conv_kernel_wres(x_ref, w_ref, b_ref, o_ref):
    # Weight-resident schedule: one dot per grid step, no K axis / accumulator.
    acc = jnp.dot(x_ref[...], w_ref[...], preferred_element_type=jnp.float32)
    o_ref[...] = (acc + b_ref[...].astype(jnp.float32)).astype(o_ref.dtype)


def _conv_kernel_ksplit(x_ref, w_ref, b_ref, o_ref, acc_ref):
    k = pl.program_id(2)

    @pl.when(k == 0)
    def _():
        acc_ref[...] = jnp.zeros_like(acc_ref)

    acc_ref[...] += jnp.dot(x_ref[...], w_ref[...],
                            preferred_element_type=jnp.float32)

    @pl.when(k == pl.num_programs(2) - 1)
    def _():
        o_ref[...] = (acc_ref[...] +
                      b_ref[...].astype(jnp.float32)).astype(o_ref.dtype)


def _conv_matmul(patches, w_mat, bias2d, out_dtype, cap, budget):
    """(M, K) @ (K, O) + bias with per-generation tile selection."""
    M, K = patches.shape
    O = w_mat.shape[1]
    a_b = patches.dtype.itemsize
    w_b = w_mat.dtype.itemsize
    o_b = jnp.dtype(out_dtype).itemsize

    cost = pl.CostEstimate(
        flops=2 * M * K * O, transcendentals=0,
        bytes_accessed=M * K * a_b + K * O * w_b + M * O * o_b)

    # ---- Path A: weight-resident (no K grid axis). ----------------------
    # grid = (O tiles, M tiles) with the M axis innermost: the weight block
    # index is constant across consecutive steps, so Pallas skips its re-DMA
    # and only the (TM, K) activations stream -> reuse ~ TM flops/byte.
    tn = O if O <= 512 else 512                        # 512 is lane-aligned
    if 2 * K * tn * w_b <= budget // 2:
        w_bytes = 2 * K * tn * w_b                     # double-buffered weight
        per_row = 2 * (K * a_b + tn * o_b)             # db activations + outputs
        tm = int(min(M, max(8, (budget - w_bytes) // per_row)))
        if tm < M:
            tm = (tm // 256) * 256 if tm >= 256 else (tm // 8) * 8
            tm = max(tm, 8)
        need = w_bytes + 2 * tm * (K * a_b + tn * o_b)
        grid = (pl.cdiv(O, tn), pl.cdiv(M, tm))
        return pl.pallas_call(
            _conv_kernel_wres,
            out_shape=jax.ShapeDtypeStruct((M, O), out_dtype),
            grid=grid,
            in_specs=[
                pl.BlockSpec((tm, K), lambda j, i: (i, 0)),
                pl.BlockSpec((K, tn), lambda j, i: (0, j)),  # resident over i
                pl.BlockSpec((1, tn), lambda j, i: (0, j)),
            ],
            out_specs=pl.BlockSpec((tm, tn), lambda j, i: (i, j)),
            compiler_params=pltpu.CompilerParams(
                dimension_semantics=("parallel", "parallel"),
                vmem_limit_bytes=_vmem_limit(need, cap)),
            cost_estimate=cost,
        )(patches, w_mat, bias2d)

    # ---- Path B: K-split accumulator schedule (weight too big to pin). ---
    TM = min(M, 512)
    TN = O if O <= 256 else 256
    TK = K
    for cand in (512, 256, 128):
        if K > cand and K % cand == 0:
            TK = cand
            break
    need = 2 * (TM * TK * a_b + TK * TN * w_b + TM * TN * o_b) + TM * TN * 4
    grid = (pl.cdiv(M, TM), pl.cdiv(O, TN), K // TK)
    return pl.pallas_call(
        _conv_kernel_ksplit,
        out_shape=jax.ShapeDtypeStruct((M, O), out_dtype),
        grid=grid,
        in_specs=[
            pl.BlockSpec((TM, TK), lambda i, j, k: (i, k)),
            pl.BlockSpec((TK, TN), lambda i, j, k: (k, j)),
            pl.BlockSpec((1, TN), lambda i, j, k: (0, j)),
        ],
        out_specs=pl.BlockSpec((TM, TN), lambda i, j, k: (i, j)),
        scratch_shapes=[pltpu.VMEM((TM, TN), jnp.float32)],
        compiler_params=pltpu.CompilerParams(
            dimension_semantics=("parallel", "parallel", "arbitrary"),
            vmem_limit_bytes=_vmem_limit(need, cap)),
        cost_estimate=cost,
    )(patches, w_mat, bias2d)


class SpatialPool:
    """JAX/Pallas port of llava SpatialPool (forward semantics only)."""

    def __init__(self, mode, stride, hidden_size, out_channels=None, key=None):
        self.mode = mode
        self.stride = stride
        self.hidden_size = hidden_size
        self.out_channels = hidden_size if out_channels is None else out_channels
        self.weight = None
        self.bias = None
        self._w_mat_f32 = None
        self._bias2d = None
        self._w_cache = {}
        if mode == "conv":
            # nn.Conv2d default init: U(-b, b), b = 1/sqrt(fan_in)
            k1, k2 = jax.random.split(key)
            fan_in = hidden_size * stride * stride
            bound = 1.0 / math.sqrt(fan_in)
            self.weight = jax.random.uniform(
                k1, (self.out_channels, hidden_size, stride, stride),
                jnp.float32, -bound, bound)
            self.bias = jax.random.uniform(
                k2, (self.out_channels,), jnp.float32, -bound, bound)
            # Hoisted (per-call -> per-init) weight layout transform:
            # (O, C, kh, kw) -> (kh, kw, C, O) -> (K, O); bias as (1, O) f32.
            K = stride * stride * hidden_size
            self._w_mat_f32 = jnp.transpose(self.weight, (2, 3, 1, 0)).reshape(
                K, self.out_channels)
            self._bias2d = self.bias.reshape(1, self.out_channels).astype(jnp.float32)
        elif mode not in ("average", "max"):
            raise ValueError(f"Unknown pooling mode: {mode}.")

    def __call__(self, image_features, images):
        # Mirror the PyTorch shape arithmetic (including its use of ori_H twice).
        ori_W = int(math.sqrt(image_features.shape[1] * images.shape[3] // images.shape[2]))
        ori_H = int(ori_W * images.shape[2] // images.shape[3])
        B, N, F = image_features.shape
        if ori_H * ori_H != N:
            raise ValueError(
                f"SpatialPool assumes a square token grid: N={N} != {ori_H}^2.")
        s = self.stride
        Ho = ori_H // s
        Wo = ori_H // s
        P = Ho * Wo

        cap, budget = _vmem_caps()

        xg = image_features.reshape(B, ori_H, ori_H, F)   # free, contiguous view
        if ori_H % s:                                      # crop only when needed (copies)
            xg = xg[:, : Ho * s, : Wo * s, :]

        if self.mode in ("average", "max"):
            # Free, contiguous view: (B, Ho, s, Wo, s*F) — no HBM transpose.
            x5 = xg.reshape(B, Ho, s, Wo, s * F)
            in_row = s * Wo * s * F * x5.dtype.itemsize
            out_row = Wo * F * jnp.dtype(image_features.dtype).itemsize
            per_row = 2 * (in_row + out_row)               # double-buffered in + out
            TR = int(max(1, min(Ho, budget // per_row)))
            need = TR * per_row
            out4 = pl.pallas_call(
                functools.partial(_pool_kernel, s=s, feat=F, mode=self.mode),
                out_shape=jax.ShapeDtypeStruct((B, Ho, Wo, F), image_features.dtype),
                grid=(B, pl.cdiv(Ho, TR)),                 # ragged last block masked
                in_specs=[pl.BlockSpec((1, TR, s, Wo, s * F),
                                       lambda b, r: (b, r, 0, 0, 0))],
                out_specs=pl.BlockSpec((1, TR, Wo, F),
                                       lambda b, r: (b, r, 0, 0)),
                compiler_params=pltpu.CompilerParams(
                    dimension_semantics=("parallel", "parallel"),
                    vmem_limit_bytes=_vmem_limit(need, cap)),
            )(x5)
            return out4.reshape(B, P, F)

        # conv mode: patchify-conv == tiled matmul over flattened patches.
        # TODO(synk): fuse the patch extraction into the matmul kernel (assemble
        # the (TM, K) LHS from the (B, Ho, s, Wo, s*F) view with static lane
        # slices) to drop the extra HBM pass when the conv is not MXU-bound.
        K = s * s * F
        O = self.out_channels
        xp = xg.reshape(B, Ho, s, Wo, s, F)
        xp = jnp.transpose(xp, (0, 1, 3, 2, 4, 5))         # (B, Ho, Wo, s, s, F)
        patches = xp.reshape(B * P, K)                     # patch order: (ki, kj, c)
        dt = image_features.dtype
        w_mat = self._w_cache.get(dt)
        if w_mat is None:
            # bf16 activations -> bf16 weights (f32 accumulation in-kernel).
            # f32 activations keep f32 weights: exact, but slower multi-pass MXU.
            w_mat = self._w_mat_f32.astype(dt)
            self._w_cache[dt] = w_mat
        out2d = _conv_matmul(patches, w_mat, self._bias2d, dt, cap, budget)
        return out2d.reshape(B, P, O)


def _reference(mode, image_features, images, stride, weight=None, bias=None):
    """Pure-JAX NCHW reference mirroring the PyTorch forward."""
    ori_W = int(math.sqrt(image_features.shape[1] * images.shape[3] // images.shape[2]))
    ori_H = int(ori_W * images.shape[2] // images.shape[3])
    B, _, F = image_features.shape
    x = jnp.transpose(image_features.reshape(B, ori_H, ori_H, F), (0, 3, 1, 2))  # NCHW
    win = (1, 1, stride, stride)
    if mode == "average":
        y = jax.lax.reduce_window(x, 0.0, jax.lax.add, win, win, "VALID") / (stride * stride)
    elif mode == "max":
        y = jax.lax.reduce_window(x, -jnp.inf, jax.lax.max, win, win, "VALID")
    else:
        y = jax.lax.conv_general_dilated(
            x, weight, (stride, stride), "VALID",
            dimension_numbers=("NCHW", "OIHW", "NCHW")) + bias[None, :, None, None]
    Bo, C, Ho, Wo = y.shape
    return jnp.transpose(y.reshape(Bo, C, Ho * Wo), (0, 2, 1))


if __name__ == "__main__":
    key = jax.random.PRNGKey(0)
    k_feat, k_img, k_conv = jax.random.split(key, 3)

    B, F = 2, 32
    ori_HW = 8                      # 8x8 token grid -> N = 64
    N = ori_HW * ori_HW
    stride = 2
    image_features = jax.random.normal(k_feat, (B, N, F), jnp.float32)
    images = jax.random.normal(k_img, (B, 3, 32, 32), jnp.float32)  # square -> ori_H == ori_W == 8

    ok = True
    for mode in ("average", "max", "conv"):
        pool = SpatialPool(mode=mode, stride=stride, hidden_size=F,
                           out_channels=F, key=k_conv)
        out = pool(image_features, images)
        out = jax.block_until_ready(out)
        ref = _reference(mode, image_features, images, stride,
                         weight=pool.weight, bias=pool.bias)
        if out.shape != ref.shape or not jnp.allclose(out, ref, atol=1e-4, rtol=1e-4):
            ok = False
            print(f"mode={mode} mismatch: max err "
                  f"{float(jnp.max(jnp.abs(out - ref)))}")

    if ok:
        print("KERNEL_OK")
</pallas_src>

<mosaic_0001>
module attributes {stable_mosaic.version = 11 : i64} {
  func.func @_pool_kernel(%arg0: i32, %arg1: i32, %arg2: memref<1x4x2x4x64xf32, #tpu.memory_space<vmem>>, %arg3: memref<1x4x4x32xf32, #tpu.memory_space<vmem>>) attributes {dimension_semantics = [#tpu.dimension_semantics<parallel>, #tpu.dimension_semantics<parallel>], iteration_bounds = array<i64: 2, 1>, scalar_prefetch = 0 : i64, scratch_operands = 0 : i64, tpu.core_type = #tpu.core_type<tc>, window_params = [{transform_indices = @transform_0, window_bounds = array<i64: 1, 4, 2, 4, 64>}, {transform_indices = @transform_1, window_bounds = array<i64: 1, 4, 4, 32>}]} {
    %c0 = arith.constant 0 : index
    %c0_0 = arith.constant 0 : index
    %c0_1 = arith.constant 0 : index
    %c0_2 = arith.constant 0 : index
    %c0_3 = arith.constant 0 : index
    %0 = vector.load %arg2[%c0, %c0_0, %c0_1, %c0_2, %c0_3] : memref<1x4x2x4x64xf32, #tpu.memory_space<vmem>>, vector<1x4x2x4x64xf32>
    %1 = vector.shape_cast %0 : vector<1x4x2x4x64xf32> to vector<4x2x4x64xf32>
    %2 = vector.extract_strided_slice %1 {offsets = [0, 0, 0, 0], sizes = [4, 1, 4, 64], strides = [1, 1, 1, 1]} : vector<4x2x4x64xf32> to vector<4x1x4x64xf32>
    %3 = vector.shape_cast %2 : vector<4x1x4x64xf32> to vector<4x4x64xf32>
    %4 = vector.extract_strided_slice %1 {offsets = [0, 1, 0, 0], sizes = [4, 1, 4, 64], strides = [1, 1, 1, 1]} : vector<4x2x4x64xf32> to vector<4x1x4x64xf32>
    %5 = vector.shape_cast %4 : vector<4x1x4x64xf32> to vector<4x4x64xf32>
    %6 = arith.addf %3, %5 : vector<4x4x64xf32>
    %7 = vector.extract_strided_slice %6 {offsets = [0, 0, 0], sizes = [4, 4, 32], strides = [1, 1, 1]} : vector<4x4x64xf32> to vector<4x4x32xf32>
    %8 = vector.extract_strided_slice %6 {offsets = [0, 0, 32], sizes = [4, 4, 32], strides = [1, 1, 1]} : vector<4x4x64xf32> to vector<4x4x32xf32>
    %9 = arith.addf %7, %8 : vector<4x4x32xf32>
    %cst = arith.constant 2.500000e-01 : f32
    %10 = vector.broadcast %cst : f32 to vector<4x4x32xf32>
    %11 = arith.mulf %9, %10 : vector<4x4x32xf32>
    %c0_4 = arith.constant 0 : index
    %c0_5 = arith.constant 0 : index
    %c0_6 = arith.constant 0 : index
    %c0_7 = arith.constant 0 : index
    %12 = vector.load %arg3[%c0_4, %c0_5, %c0_6, %c0_7] : memref<1x4x4x32xf32, #tpu.memory_space<vmem>>, vector<1x4x4x32xf32>
    %13 = vector.shape_cast %12 : vector<1x4x4x32xf32> to vector<4x4x32xf32>
    %14 = vector.shape_cast %11 : vector<4x4x32xf32> to vector<1x4x4x32xf32>
    tpu.vector_store %arg3[%c0_4, %c0_5, %c0_6, %c0_7], %14 {strides = array<i32>} : memref<1x4x4x32xf32, #tpu.memory_space<vmem>>, vector<1x4x4x32xf32>,
    return
  }
  func.func @transform_0(%arg0: i32, %arg1: i32) -> (i32, i32, i32, i32, i32) {
    %c0_i32 = arith.constant 0 : i32
    %c0_i32_0 = arith.constant 0 : i32
    %c0_i32_1 = arith.constant 0 : i32
    %c0_i32_2 = arith.constant 0 : i32
    return %arg0, %arg1, %c0_i32, %c0_i32_0, %c0_i32_1 : i32, i32, i32, i32, i32
  }
  func.func @transform_1(%arg0: i32, %arg1: i32) -> (i32, i32, i32, i32) {
    %c0_i32 = arith.constant 0 : i32
    %c0_i32_0 = arith.constant 0 : i32
    %c0_i32_1 = arith.constant 0 : i32
    return %arg0, %arg1, %c0_i32, %c0_i32_0 : i32, i32, i32, i32
  }
}

</mosaic_0001>

<llo_original>
// kernel: tpu_custom_call.1
$region0: #{tpu_custom_call.1}
  #allocation0 [shape = 'u32[]', space=smem, size = 0x4, offset = 0x4, fixed_abs, tag = 'smem constant byte address 0x4 - core index']
  #allocation1 [shape = 'u32[144,128]{1,0:T(1,128)}', space=vmem, size = 0x12000, scoped, tag = 'internal scratch']
  %s0 = inlined_call_operand.hbm [shape: f32[2,4,2,4,64], index: 0, kind: input, shape index: {}]
  %s1 = inlined_call_operand.hbm [shape: f32[2,4,4,32], index: 1, kind: output, shape index: {}]
  %s2 = sld [smem:[#allocation0]]
  $region41: #{tpu_custom_call.1} parent=0
    _
  %s4 = ssub.s32 1, %s2
  %s5 = scalar_select 0, %s4, %s2
  $region1: #{tpu_custom_call.1} parent=0
    #allocation2 [shape = 'u8[32768]{0}', space=vmem, size = 0x8000, scoped, tag = 'input window, operand 0']
    #allocation3 [shape = 's32[2]{0}', space=sflag, size = 0x8, scoped, tag = 'scoped memory for tpu_custom_call.1']
    #allocation4 [shape = 's32[2]{0}', space=sflag, size = 0x8, scoped, tag = 'scoped memory for tpu_custom_call.1']
    #allocation5 [shape = 'u8[16384]{0}', space=vmem, size = 0x4000, scoped, tag = 'output window, operand 0']
    %6 = vsyncpa [#allocation3], 0
    %s7 = scalar_lea.sflag [#allocation3], 1
    %8 = vsyncpa %s7, 0
    %9 = vsyncpa [#allocation4], 0
    %s10 = scalar_lea.sflag [#allocation4], 1
    %11 = vsyncpa %s10, 0
    loop: start=0, step=1, limit=4
    $region2: #{tpu_custom_call.1} parent=1 // loop_pre_header
      _
    $region3: #{tpu_custom_call.1} parent=1 // loop_header
      %s13 = sphi 0, %s17
      %p14 = scmp.ge.s32.totalorder %s13, 4
      %s20 = sphi 0, %s32
      %s21 = sphi 0, %s28
      %s22 = sphi 0, %s20
      %s23 = sphi 0, %s21
      %s24 = sphi 0, %s22
      %s25 = sphi 0, %s23
      %s37 = sphi 0, %s39
      %s40 = sphi 0, %s37
      %s41 = sphi 0, %s40
      %s57 = sphi 0, %s41
      %s65 = sphi 0, %s67
      %s68 = sphi 0, %s65
      %s69 = sphi 0, %s68
      %s85 = sphi 0, %s69
    $region4: #{tpu_custom_call.1} parent=1 // loop_header_branch
      %16 = sbr.rel (%p14) target = $region8
    $region5: #{tpu_custom_call.1} parent=1 // loop_body
      %s18 = ssub.s32 %s13, 1
      %s19 = ssub.s32 %s13, 2
      %s26 = sadd.s32 1, %s21
      %p27 = scmp.ge.s32.totalorder %s26, 1
      %s28 = scalar_select %p27, 0, %s26
      %s29 = sadd.s32 1, %s20
      %s30 = scalar_select %p27, %s29, %s20
      %p31 = scmp.ge.s32.totalorder %s30, 2
      %s32 = scalar_select %p31, 0, %s30
      %s33 = ssub.s32 %s20, %s32
      %s34 = ssub.s32 %s21, %s28
      %s35 = sor.u32 %s33, %s34
      %p36 = scmp.eq.s32.totalorder %s35, 0
      %s38 = sadd.s32 %s37, 1
      %s39 = scalar_select %p36, %s37, %s38
      %p42 = pneg %p36
      %p43 = scmp.eq.s32.totalorder %s13, 1
      %p44 = por %p42, %p43
      %p45 = scmp.ne.s32.totalorder %s37, %s40
      %p46 = scmp.eq.s32.totalorder %s13, 0
      %p47 = por %p45, %p46
      %p48 = scmp.ne.s32.totalorder %s37, %s40
      %p49 = scmp.eq.s32.totalorder %s18, 1
      %p50 = por %p48, %p49
      %p51 = scmp.ne.s32.totalorder %s40, %s41
      %p52 = scmp.eq.s32.totalorder %s18, 0
      %p53 = por %p51, %p52
      %p54 = scmp.ne.s32.totalorder %s40, %s41
      %p55 = scmp.eq.s32.totalorder %s19, 1
      %p56 = por %p54, %p55
      %p58 = scmp.ne.s32.totalorder %s41, %s57
      %p59 = scmp.eq.s32.totalorder %s19, 0
      %p60 = por %p58, %p59
      %s61 = ssub.s32 %s20, %s32
      %s62 = ssub.s32 %s21, %s28
      %s63 = sor.u32 %s61, %s62
      %p64 = scmp.eq.s32.totalorder %s63, 0
      %s66 = sadd.s32 %s65, 1
      %s67 = scalar_select %p64, %s65, %s66
      %p70 = pneg %p64
      %p71 = scmp.eq.s32.totalorder %s13, 1
      %p72 = por %p70, %p71
      %p73 = scmp.ne.s32.totalorder %s65, %s68
      %p74 = scmp.eq.s32.totalorder %s13, 0
      %p75 = por %p73, %p74
      %p76 = scmp.ne.s32.totalorder %s65, %s68
      %p77 = scmp.eq.s32.totalorder %s18, 1
      %p78 = por %p76, %p77
      %p79 = scmp.ne.s32.totalorder %s68, %s69
      %p80 = scmp.eq.s32.totalorder %s18, 0
      %p81 = por %p79, %p80
      %p82 = scmp.ne.s32.totalorder %s68, %s69
      %p83 = scmp.eq.s32.totalorder %s19, 1
      %p84 = por %p82, %p83
      %p86 = scmp.ne.s32.totalorder %s69, %s85
      %p87 = scmp.eq.s32.totalorder %s19, 0
      %p88 = por %p86, %p87
      %p89 = scmp.le.s32.totalorder 1, %s13
      %p90 = scmp.lt.s32.totalorder %s13, 3
      %p91 = pnand %p89, %p90
      %p92 = pneg %p91
      // Predicated region
      $region9: #{tpu_custom_call.1} parent=5 // pred_check
        _
      $region10: #{tpu_custom_call.1} parent=5 // pred_check_branch
        %94 = sbr.rel (%p91) target = $region12
      $region11: #{tpu_custom_call.1} parent=5 // pred_region
        %s95 = ssub.s32 %s13, 1
      $region12: #{tpu_custom_call.1} parent=5 // pred_fallthru
        _
      %p96 = scmp.lt.s32.totalorder %s13, 2
      // Predicated region
      $region13: #{tpu_custom_call.1} parent=5 // pred_check
        %p97 = pneg %p96
      $region14: #{tpu_custom_call.1} parent=5 // pred_check_branch
        %99 = sbr.rel (%p97) target = $region16
      $region15: #{tpu_custom_call.1} parent=5 // pred_region
        // Predicated region
        $region17: #{tpu_custom_call.1} parent=15 // pred_check
          %p100 = pneg %p47
        $region18: #{tpu_custom_call.1} parent=15 // pred_check_branch
          %102 = sbr.rel (%p100) target = $region20
        $region19: #{tpu_custom_call.1} parent=15 // pred_region
          %s103 = sand.u32 %s37, 1
          %s104 = scalar_lea.sflag [#allocation3], %s103
          %s105 = sand.u32 %s37, 1
          %s106 = smul.addr %s105, 32
          %s107 = scalar_lea.vmem [#allocation2], %s106
          %s108 = smul.u32 4, %s21
          %s110 = ssub.s32 512, 512
          %111 = vsyncadd %s104, %s110
          %s112 = smul.addr %s108, 2
          %s113 = smul.addr %s20, 8
          %s114 = sadd.s32 %s112, %s113
          %s115 = smul.addr %s114, 64
          %s116 = scalar_lea.hbm %s0, %s115
          %s117 = sshll.u32 %s107, 4
          %s118 = int_to_ptr.vmem [resolvable:$true] %s117
          %123 = dma.hbm_to_vmem [thread:$0]  %s116, 512, %s118, %s104, 64, 64, 4
        $region20: #{tpu_custom_call.1} parent=15 // pred_fallthru
          _
      $region16: #{tpu_custom_call.1} parent=5 // pred_fallthru
        _
      %p124 = scmp.le.s32.totalorder 1, %s13
      %p125 = scmp.lt.s32.totalorder %s13, 3
      %p126 = pnand %p124, %p125
      %p127 = pneg %p126
      // Predicated region
      $region21: #{tpu_custom_call.1} parent=5 // pred_check
        _
      $region22: #{tpu_custom_call.1} parent=5 // pred_check_branch
        %129 = sbr.rel (%p126) target = $region24
      $region23: #{tpu_custom_call.1} parent=5 // pred_region
        %s130 = ssub.s32 %s13, 1
        %s131 = sand.u32 %s40, 1
        %s132 = scalar_lea.sflag [#allocation3], %s131
        %s133 = sand.u32 %s40, 1
        %s134 = smul.addr %s133, 32
        %s135 = scalar_lea.vmem [#allocation2], %s134
        // Predicated region
        $region25: #{tpu_custom_call.1} parent=23 // pred_check
          %p136 = pneg %p53
        $region26: #{tpu_custom_call.1} parent=23 // pred_check_branch
          %138 = sbr.rel (%p136) target = $region28
        $region27: #{tpu_custom_call.1} parent=23 // pred_region
          %139 = dma.done %s132, 512
        $region28: #{tpu_custom_call.1} parent=23 // pred_fallthru
          _
        %s140 = sand.u32 %s40, 1
        %s141 = scalar_lea.sflag [#allocation3], %s140
        %s142 = sand.u32 %s40, 1
        %s143 = smul.addr %s142, 32
        %s144 = scalar_lea.vmem [#allocation2], %s143
        %p145 = pneg %p53
        %p146 = pneg %p50
        %p147 = pneg %p81
        %p148 = pneg %p78
        %s149 = sand.u32 %s68, 1
        %s150 = scalar_lea.sflag [#allocation4], %s149
        %s151 = sand.u32 %s68, 1
        %s152 = smul.addr %s151, 16
        %s153 = scalar_lea.vmem [#allocation5], %s152
        %s154 = smul.u32 4, %s23
        %s155 = smul.u32 4, %s23
        %v156 = vld [vmem:[%s135] sm:$0xf]
        %v157 = vld [vmem:[%s135 + $0x4] sm:$0xf]
        %v158 = vld [vmem:[%s135 + $0x8] sm:$0xf]
        %v159 = vld [vmem:[%s135 + $0xc] sm:$0xf]
        %v160 = vld [vmem:[%s135 + $0x10] sm:$0xf]
        %v161 = vld [vmem:[%s135 + $0x14] sm:$0xf]
        %v162 = vld [vmem:[%s135 + $0x18] sm:$0xf]
        %v163 = vld [vmem:[%s135 + $0x1c] sm:$0xf]
        %v164 = vadd.f32 %v156, %v157
        %v165 = vadd.f32 %v158, %v159
        %v166 = vadd.f32 %v160, %v161
        %v167 = vadd.f32 %v162, %v163
        %172 = vrot.lane.b32.xlu0 %v164, 96
        %v173 = vpop.permute.xlu0 %172
        %174 = vrot.lane.b32.xlu0 %v165, 96
        %v175 = vpop.permute.xlu0 %174
        %176 = vrot.lane.b32.xlu0 %v166, 96
        %v177 = vpop.permute.xlu0 %176
        %178 = vrot.lane.b32.xlu0 %v167, 96
        %v179 = vpop.permute.xlu0 %178
        %v184 = vadd.f32 %v164, %v173
        %v185 = vadd.f32 %v165, %v175
        %v186 = vadd.f32 %v166, %v177
        %v187 = vadd.f32 %v167, %v179
        %v188 = vmul.f32 %v184, 0.25
        %v189 = vmul.f32 %v185, 0.25
        %v190 = vmul.f32 %v186, 0.25
        %v191 = vmul.f32 %v187, 0.25
        %vm192 = vcmask 257024
        %193 = vst.msk [vmem:[%s153] sm:$0xf] %vm192, %v188
        %194 = vst.msk [vmem:[%s153 + $0x4] sm:$0xf] %vm192, %v189
        %195 = vst.msk [vmem:[%s153 + $0x8] sm:$0xf] %vm192, %v190
        %196 = vst.msk [vmem:[%s153 + $0xc] sm:$0xf] %vm192, %v191
        %s197 = sand.u32 %s68, 1
        %s198 = scalar_lea.sflag [#allocation4], %s197
        %s199 = sand.u32 %s68, 1
        %s200 = smul.addr %s199, 16
        %s201 = scalar_lea.vmem [#allocation5], %s200
        // Predicated region
        $region29: #{tpu_custom_call.1} parent=23 // pred_check
          %p202 = pneg %p78
        $region30: #{tpu_custom_call.1} parent=23 // pred_check_branch
          %204 = sbr.rel (%p202) target = $region32
        $region31: #{tpu_custom_call.1} parent=23 // pred_region
          %s205 = smul.u32 4, %s23
          %s207 = ssub.s32 256, 256
          %208 = vsyncadd %s198, %s207
          %s209 = smul.addr %s22, 4
          %s210 = sadd.s32 %s205, %s209
          %s211 = smul.addr %s210, 64
          %s212 = scalar_lea.hbm %s1, %s211
          %s213 = sshll.u32 %s201, 4
          %s214 = int_to_ptr.vmem [resolvable:$true] %s213
          %219 = dma.vmem_to_hbm [thread:$0]  %s214, 256, %s212, %s198, 64, 64, 4
        $region32: #{tpu_custom_call.1} parent=23 // pred_fallthru
          _
      $region24: #{tpu_custom_call.1} parent=5 // pred_fallthru
        _
      %p220 = scmp.le.s32.totalorder 2, %s13
      // Predicated region
      $region33: #{tpu_custom_call.1} parent=5 // pred_check
        %p221 = pneg %p220
      $region34: #{tpu_custom_call.1} parent=5 // pred_check_branch
        %223 = sbr.rel (%p221) target = $region36
      $region35: #{tpu_custom_call.1} parent=5 // pred_region
        %s224 = ssub.s32 %s13, 2
        // Predicated region
        $region37: #{tpu_custom_call.1} parent=35 // pred_check
          %p225 = pneg %p84
        $region38: #{tpu_custom_call.1} parent=35 // pred_check_branch
          %227 = sbr.rel (%p225) target = $region40
        $region39: #{tpu_custom_call.1} parent=35 // pred_region
          %s228 = sand.u32 %s69, 1
          %s229 = scalar_lea.sflag [#allocation4], %s228
          %s230 = sand.u32 %s69, 1
          %s231 = smul.addr %s230, 16
          %s232 = scalar_lea.vmem [#allocation5], %s231
          %233 = dma.done %s229, 256
        $region40: #{tpu_custom_call.1} parent=35 // pred_fallthru
          _
      $region36: #{tpu_custom_call.1} parent=5 // pred_fallthru
        _
    $region6: #{tpu_custom_call.1} parent=1 // loop_footer
      %s17 = sadd.s32 1, %s13
    $region7: #{tpu_custom_call.1} parent=1 // loop_footer_branch
      %12 = sbr.rel target = $region3
    $region8: #{tpu_custom_call.1} parent=1 // loop_exit
      _
    %234 = vsyncpa [#allocation3], 1
    %s235 = scalar_lea.sflag [#allocation3], 1
    %236 = vsyncpa %s235, 1
    %237 = vsyncpa [#allocation4], 1
    %s238 = scalar_lea.sflag [#allocation4], 1
    %239 = vsyncpa %s238, 1

</llo_original>
